<compile_context>
chip_gen: v5e
topology: v5e:2x2
jax: 0.10.0
libtpu: 0.0.40
codegen_flags: <defaults>
</compile_context>

<pallas_src>
import functools

import jax
import jax.numpy as jnp
from jax.experimental import pallas as pl
from jax.experimental.pallas import tpu as pltpu

IN_FEATURES = 28
F_PAD = 32            # layer-1 contraction padded to a packed bf16 K tile
OUT_FEATURES = 2
OUT_COMPUTE_PAD = 128  # lane-dense width for the *in-kernel* final matmul only


def _round_up(n, m):
    return ((n + m - 1) // m) * m


def _cdiv(a, b):
    return -(-a // b)


# --------------------------------------------------------------------------
# Kernel
# --------------------------------------------------------------------------
def _mlp_kernel(x_ref,
                w1_ref, b1_ref,
                w2_ref,
                w3_ref, b3_ref,
                w4_ref, b4_ref,
                w5_ref, b5_ref,
                w6_ref, b6_ref,
                wo_ref, bo_ref,
                o_ref):
    """One batch tile: 7 matmuls (bf16 in, f32 acc) + bias/ReLU in f32."""

    def layer(h_bf16, w_ref, b_ref=None):
        acc = jnp.dot(h_bf16, w_ref[...], preferred_element_type=jnp.float32)
        if b_ref is not None:
            acc = acc + b_ref[...]
        # ReLU in f32 on the VPU, then narrow to bf16 for the next MXU matmul.
        return jnp.maximum(acc, 0.0).astype(jnp.bfloat16)

    h = x_ref[...].astype(jnp.bfloat16)  # (TB, 32) f32 -> bf16 in-kernel
    h = layer(h, w1_ref, b1_ref)         # (TB, 64)
    h = layer(h, w2_ref)                 # (TB, 128)  (no bias)
    h = layer(h, w3_ref, b3_ref)         # (TB, 128)
    h = layer(h, w4_ref, b4_ref)         # (TB, 256)
    h = layer(h, w5_ref, b5_ref)         # (TB, 256)
    h = layer(h, w6_ref, b6_ref)         # (TB, 256)
    out = jnp.dot(h, wo_ref[...], preferred_element_type=jnp.float32) + bo_ref[...]
    # Store only the 2 real output columns (lane-masked store; writeback is
    # 8 B/row to HBM instead of 512 B/row).
    o_ref[...] = out[:, :OUT_FEATURES].astype(o_ref.dtype)


# --------------------------------------------------------------------------
# Wrapper
# --------------------------------------------------------------------------
def _choose_tile(B, tb):
    """Batch tile: big (default 2048), multiple of 8, and capped at ~half the
    8-aligned batch so the grid has >=2 steps whenever the batch allows it
    (keeps both v7x TensorCores busy; harmless on v5e/v6e)."""
    b8 = _round_up(B, 8)
    half = _round_up(_cdiv(b8, 2), 8)
    return max(8, min(tb, half))


@functools.partial(jax.jit, static_argnames=("tb",))
def deep_network_forward(x, kparams, tb=2048):
    """x: (B, 28) float32.  kparams: output of prepare_params().  -> (B, 2) f32."""
    B, F = x.shape
    TB = _choose_tile(B, tb)
    B_pad = _round_up(B, TB)

    # Single pad pass: batch rows -> B_pad, features 28 -> 32 (zeros).  The
    # bf16 cast happens inside the kernel, so x makes only one HBM read here.
    x_p = jnp.pad(x, ((0, B_pad - B), (0, F_PAD - F)))

    args = (
        x_p,
        kparams["w1"], kparams["b1"],
        kparams["w2"],
        kparams["w3"], kparams["b3"],
        kparams["w4"], kparams["b4"],
        kparams["w5"], kparams["b5"],
        kparams["w6"], kparams["b6"],
        kparams["wo"], kparams["bo"],
    )

    def _resident_spec(a):
        # Full-array block with a constant index_map: DMA'd once, stays in
        # VMEM across every grid step.
        return pl.BlockSpec(a.shape, lambda i: (0,) * a.ndim)

    in_specs = [pl.BlockSpec((TB, F_PAD), lambda i: (i, 0))]    # x: tiled over batch
    in_specs += [_resident_spec(a) for a in args[1:]]           # weights/biases: resident
    out_spec = pl.BlockSpec((TB, OUT_FEATURES), lambda i: (i, 0))

    out = pl.pallas_call(
        _mlp_kernel,
        out_shape=jax.ShapeDtypeStruct((B_pad, OUT_FEATURES), jnp.float32),
        grid=(B_pad // TB,),
        in_specs=in_specs,
        out_specs=out_spec,
        compiler_params=pltpu.CompilerParams(
            # Batch axis is independent -> shardable across v7x's two cores.
            # NOTE: raise vmem_limit_bytes here only if tb is pushed >= 4K
            # (at tb=2048 the footprint is a few MB, well under the default).
            dimension_semantics=("parallel",)),
    )(*args)

    return out[:B]


def prepare_params(params):
    """One-time, non-jitted weight prep (hoisted out of the forward):
    bf16 casts for all weights, w1 rows padded 28->32, wo/bo padded to a
    lane-dense 128-wide compute tile (only 2 columns are ever stored)."""
    bf16 = lambda a: a.astype(jnp.bfloat16)
    w1 = jnp.pad(params["w1"], ((0, F_PAD - IN_FEATURES), (0, 0))).astype(jnp.bfloat16)
    wo = jnp.pad(params["wo"], ((0, 0), (0, OUT_COMPUTE_PAD - OUT_FEATURES))).astype(jnp.bfloat16)
    bo = jnp.pad(params["bo"], ((0, 0), (0, OUT_COMPUTE_PAD - OUT_FEATURES)))
    return {
        "w1": w1, "b1": params["b1"],
        "w2": bf16(params["w2"]),
        "w3": bf16(params["w3"]), "b3": params["b3"],
        "w4": bf16(params["w4"]), "b4": params["b4"],
        "w5": bf16(params["w5"]), "b5": params["b5"],
        "w6": bf16(params["w6"]), "b6": params["b6"],
        "wo": wo, "bo": bo,
    }


# --------------------------------------------------------------------------
# Init + reference
# --------------------------------------------------------------------------
def init_params(key):
    """Deterministic init mimicking nn.Linear's default U(-1/sqrt(fan_in), +)."""
    def linear(key, fan_in, fan_out, bias=True):
        kw, kb = jax.random.split(key)
        bound = 1.0 / (fan_in ** 0.5)
        w = jax.random.uniform(kw, (fan_in, fan_out), jnp.float32, -bound, bound)
        if not bias:
            return w, None
        b = jax.random.uniform(kb, (1, fan_out), jnp.float32, -bound, bound)
        return w, b

    keys = jax.random.split(key, 7)
    w1, b1 = linear(keys[0], 28, 64)
    w2, _ = linear(keys[1], 64, 128, bias=False)
    w3, b3 = linear(keys[2], 128, 128)
    w4, b4 = linear(keys[3], 128, 256)
    w5, b5 = linear(keys[4], 256, 256)
    w6, b6 = linear(keys[5], 256, 256)
    wo, bo = linear(keys[6], 256, 2)
    return {
        "w1": w1, "b1": b1,
        "w2": w2,
        "w3": w3, "b3": b3,
        "w4": w4, "b4": b4,
        "w5": w5, "b5": b5,
        "w6": w6, "b6": b6,
        "wo": wo, "bo": bo,
    }


def reference_forward(x, p):
    """Plain-JAX reference matching the kernel's arithmetic (bf16 matmul
    inputs, f32 accumulation, f32 bias/ReLU).  Note: this bf16 MXU fast path
    will not match a pure-f32 PyTorch forward bit-for-bit (deliberate)."""
    bf16 = lambda a: a.astype(jnp.bfloat16)

    def layer(h, w, b=None):
        acc = jnp.dot(bf16(h), bf16(w), preferred_element_type=jnp.float32)
        if b is not None:
            acc = acc + b
        return jnp.maximum(acc, 0.0)

    h = layer(x, p["w1"], p["b1"])
    h = layer(h, p["w2"])
    h = layer(h, p["w3"], p["b3"])
    h = layer(h, p["w4"], p["b4"])
    h = layer(h, p["w5"], p["b5"])
    h = layer(h, p["w6"], p["b6"])
    return jnp.dot(bf16(h), bf16(p["wo"]), preferred_element_type=jnp.float32) + p["bo"]


if __name__ == "__main__":
    key = jax.random.PRNGKey(0)
    k_params, k_x = jax.random.split(key)

    params = init_params(k_params)
    kparams = prepare_params(params)          # one-time weight prep (outside jit)
    x = jax.random.normal(k_x, (8, 28), jnp.float32)  # batch=8, features=28

    out = deep_network_forward(x, kparams)
    out = jax.block_until_ready(out)

    ref = reference_forward(x, params)
    assert out.shape == (8, 2), out.shape
    assert jnp.allclose(out, ref, atol=2e-3, rtol=2e-3), "mismatch vs reference"

    print("KERNEL_OK")
</pallas_src>

<mosaic_0001>
module attributes {stable_mosaic.version = 11 : i64} {
  func.func @_mlp_kernel(%arg0: i32, %arg1: memref<8x32xf32, #tpu.memory_space<vmem>>, %arg2: memref<32x64xbf16, #tpu.memory_space<vmem>>, %arg3: memref<1x64xf32, #tpu.memory_space<vmem>>, %arg4: memref<64x128xbf16, #tpu.memory_space<vmem>>, %arg5: memref<128x128xbf16, #tpu.memory_space<vmem>>, %arg6: memref<1x128xf32, #tpu.memory_space<vmem>>, %arg7: memref<128x256xbf16, #tpu.memory_space<vmem>>, %arg8: memref<1x256xf32, #tpu.memory_space<vmem>>, %arg9: memref<256x256xbf16, #tpu.memory_space<vmem>>, %arg10: memref<1x256xf32, #tpu.memory_space<vmem>>, %arg11: memref<256x256xbf16, #tpu.memory_space<vmem>>, %arg12: memref<1x256xf32, #tpu.memory_space<vmem>>, %arg13: memref<256x128xbf16, #tpu.memory_space<vmem>>, %arg14: memref<1x128xf32, #tpu.memory_space<vmem>>, %arg15: memref<8x2xf32, #tpu.memory_space<vmem>>) attributes {dimension_semantics = [#tpu.dimension_semantics<parallel>], iteration_bounds = array<i64: 1>, scalar_prefetch = 0 : i64, scratch_operands = 0 : i64, tpu.core_type = #tpu.core_type<tc>, window_params = [{transform_indices = @transform_0, window_bounds = array<i64: 8, 32>}, {pipeline_mode = #tpu.pipeline_mode<synchronous>, transform_indices = @transform_1, window_bounds = array<i64: 32, 64>}, {pipeline_mode = #tpu.pipeline_mode<synchronous>, transform_indices = @transform_2, window_bounds = array<i64: 1, 64>}, {pipeline_mode = #tpu.pipeline_mode<synchronous>, transform_indices = @transform_3, window_bounds = array<i64: 64, 128>}, {pipeline_mode = #tpu.pipeline_mode<synchronous>, transform_indices = @transform_4, window_bounds = array<i64: 128, 128>}, {pipeline_mode = #tpu.pipeline_mode<synchronous>, transform_indices = @transform_5, window_bounds = array<i64: 1, 128>}, {pipeline_mode = #tpu.pipeline_mode<synchronous>, transform_indices = @transform_6, window_bounds = array<i64: 128, 256>}, {pipeline_mode = #tpu.pipeline_mode<synchronous>, transform_indices = @transform_7, window_bounds = array<i64: 1, 256>}, {pipeline_mode = #tpu.pipeline_mode<synchronous>, transform_indices = @transform_8, window_bounds = array<i64: 256, 256>}, {pipeline_mode = #tpu.pipeline_mode<synchronous>, transform_indices = @transform_9, window_bounds = array<i64: 1, 256>}, {pipeline_mode = #tpu.pipeline_mode<synchronous>, transform_indices = @transform_10, window_bounds = array<i64: 256, 256>}, {pipeline_mode = #tpu.pipeline_mode<synchronous>, transform_indices = @transform_11, window_bounds = array<i64: 1, 256>}, {pipeline_mode = #tpu.pipeline_mode<synchronous>, transform_indices = @transform_12, window_bounds = array<i64: 256, 128>}, {pipeline_mode = #tpu.pipeline_mode<synchronous>, transform_indices = @transform_13, window_bounds = array<i64: 1, 128>}, {transform_indices = @transform_14, window_bounds = array<i64: 8, 2>}]} {
    %c0 = arith.constant 0 : index
    %c0_0 = arith.constant 0 : index
    %0 = vector.load %arg1[%c0, %c0_0] : memref<8x32xf32, #tpu.memory_space<vmem>>, vector<8x32xf32>
    %1 = arith.truncf %0 : vector<8x32xf32> to vector<8x32xbf16>
    %c0_1 = arith.constant 0 : index
    %c0_2 = arith.constant 0 : index
    %2 = vector.load %arg2[%c0_1, %c0_2] : memref<32x64xbf16, #tpu.memory_space<vmem>>, vector<32x64xbf16>
    %cst = arith.constant dense<0.000000e+00> : vector<8x64xf32>
    %3 = tpu.matmul %1, %2, %cst {dimension_numbers = #tpu.dot_dimension_numbers<[1], [0], [0], [1], [0, 0, 1, 1], [], []>} : vector<8x32xbf16>, vector<32x64xbf16>, vector<8x64xf32> -> vector<8x64xf32>
    %c0_3 = arith.constant 0 : index
    %c0_4 = arith.constant 0 : index
    %4 = vector.load %arg3[%c0_3, %c0_4] : memref<1x64xf32, #tpu.memory_space<vmem>>, vector<1x64xf32>
    %5 = vector.broadcast %4 : vector<1x64xf32> to vector<8x64xf32>
    %6 = arith.addf %3, %5 : vector<8x64xf32>
    %cst_5 = arith.constant 0.000000e+00 : f32
    %7 = vector.broadcast %cst_5 : f32 to vector<8x64xf32>
    %8 = arith.maximumf %6, %7 : vector<8x64xf32>
    %9 = arith.truncf %8 : vector<8x64xf32> to vector<8x64xbf16>
    %c0_6 = arith.constant 0 : index
    %c0_7 = arith.constant 0 : index
    %10 = vector.load %arg4[%c0_6, %c0_7] : memref<64x128xbf16, #tpu.memory_space<vmem>>, vector<64x128xbf16>
    %cst_8 = arith.constant dense<0.000000e+00> : vector<8x128xf32>
    %11 = tpu.matmul %9, %10, %cst_8 {dimension_numbers = #tpu.dot_dimension_numbers<[1], [0], [0], [1], [0, 0, 1, 1], [], []>} : vector<8x64xbf16>, vector<64x128xbf16>, vector<8x128xf32> -> vector<8x128xf32>
    %cst_9 = arith.constant 0.000000e+00 : f32
    %12 = vector.broadcast %cst_9 : f32 to vector<8x128xf32>
    %13 = arith.maximumf %11, %12 : vector<8x128xf32>
    %14 = arith.truncf %13 : vector<8x128xf32> to vector<8x128xbf16>
    %c0_10 = arith.constant 0 : index
    %c0_11 = arith.constant 0 : index
    %15 = vector.load %arg5[%c0_10, %c0_11] : memref<128x128xbf16, #tpu.memory_space<vmem>>, vector<128x128xbf16>
    %cst_12 = arith.constant dense<0.000000e+00> : vector<8x128xf32>
    %16 = tpu.matmul %14, %15, %cst_12 {dimension_numbers = #tpu.dot_dimension_numbers<[1], [0], [0], [1], [0, 0, 1, 1], [], []>} : vector<8x128xbf16>, vector<128x128xbf16>, vector<8x128xf32> -> vector<8x128xf32>
    %c0_13 = arith.constant 0 : index
    %c0_14 = arith.constant 0 : index
    %17 = vector.load %arg6[%c0_13, %c0_14] : memref<1x128xf32, #tpu.memory_space<vmem>>, vector<1x128xf32>
    %18 = vector.broadcast %17 : vector<1x128xf32> to vector<8x128xf32>
    %19 = arith.addf %16, %18 : vector<8x128xf32>
    %cst_15 = arith.constant 0.000000e+00 : f32
    %20 = vector.broadcast %cst_15 : f32 to vector<8x128xf32>
    %21 = arith.maximumf %19, %20 : vector<8x128xf32>
    %22 = arith.truncf %21 : vector<8x128xf32> to vector<8x128xbf16>
    %c0_16 = arith.constant 0 : index
    %c0_17 = arith.constant 0 : index
    %23 = vector.load %arg7[%c0_16, %c0_17] : memref<128x256xbf16, #tpu.memory_space<vmem>>, vector<128x256xbf16>
    %cst_18 = arith.constant dense<0.000000e+00> : vector<8x256xf32>
    %24 = tpu.matmul %22, %23, %cst_18 {dimension_numbers = #tpu.dot_dimension_numbers<[1], [0], [0], [1], [0, 0, 1, 1], [], []>} : vector<8x128xbf16>, vector<128x256xbf16>, vector<8x256xf32> -> vector<8x256xf32>
    %c0_19 = arith.constant 0 : index
    %c0_20 = arith.constant 0 : index
    %25 = vector.load %arg8[%c0_19, %c0_20] : memref<1x256xf32, #tpu.memory_space<vmem>>, vector<1x256xf32>
    %26 = vector.broadcast %25 : vector<1x256xf32> to vector<8x256xf32>
    %27 = arith.addf %24, %26 : vector<8x256xf32>
    %cst_21 = arith.constant 0.000000e+00 : f32
    %28 = vector.broadcast %cst_21 : f32 to vector<8x256xf32>
    %29 = arith.maximumf %27, %28 : vector<8x256xf32>
    %30 = arith.truncf %29 : vector<8x256xf32> to vector<8x256xbf16>
    %c0_22 = arith.constant 0 : index
    %c0_23 = arith.constant 0 : index
    %31 = vector.load %arg9[%c0_22, %c0_23] : memref<256x256xbf16, #tpu.memory_space<vmem>>, vector<256x256xbf16>
    %cst_24 = arith.constant dense<0.000000e+00> : vector<8x256xf32>
    %32 = tpu.matmul %30, %31, %cst_24 {dimension_numbers = #tpu.dot_dimension_numbers<[1], [0], [0], [1], [0, 0, 1, 1], [], []>} : vector<8x256xbf16>, vector<256x256xbf16>, vector<8x256xf32> -> vector<8x256xf32>
    %c0_25 = arith.constant 0 : index
    %c0_26 = arith.constant 0 : index
    %33 = vector.load %arg10[%c0_25, %c0_26] : memref<1x256xf32, #tpu.memory_space<vmem>>, vector<1x256xf32>
    %34 = vector.broadcast %33 : vector<1x256xf32> to vector<8x256xf32>
    %35 = arith.addf %32, %34 : vector<8x256xf32>
    %cst_27 = arith.constant 0.000000e+00 : f32
    %36 = vector.broadcast %cst_27 : f32 to vector<8x256xf32>
    %37 = arith.maximumf %35, %36 : vector<8x256xf32>
    %38 = arith.truncf %37 : vector<8x256xf32> to vector<8x256xbf16>
    %c0_28 = arith.constant 0 : index
    %c0_29 = arith.constant 0 : index
    %39 = vector.load %arg11[%c0_28, %c0_29] : memref<256x256xbf16, #tpu.memory_space<vmem>>, vector<256x256xbf16>
    %cst_30 = arith.constant dense<0.000000e+00> : vector<8x256xf32>
    %40 = tpu.matmul %38, %39, %cst_30 {dimension_numbers = #tpu.dot_dimension_numbers<[1], [0], [0], [1], [0, 0, 1, 1], [], []>} : vector<8x256xbf16>, vector<256x256xbf16>, vector<8x256xf32> -> vector<8x256xf32>
    %c0_31 = arith.constant 0 : index
    %c0_32 = arith.constant 0 : index
    %41 = vector.load %arg12[%c0_31, %c0_32] : memref<1x256xf32, #tpu.memory_space<vmem>>, vector<1x256xf32>
    %42 = vector.broadcast %41 : vector<1x256xf32> to vector<8x256xf32>
    %43 = arith.addf %40, %42 : vector<8x256xf32>
    %cst_33 = arith.constant 0.000000e+00 : f32
    %44 = vector.broadcast %cst_33 : f32 to vector<8x256xf32>
    %45 = arith.maximumf %43, %44 : vector<8x256xf32>
    %46 = arith.truncf %45 : vector<8x256xf32> to vector<8x256xbf16>
    %c0_34 = arith.constant 0 : index
    %c0_35 = arith.constant 0 : index
    %47 = vector.load %arg13[%c0_34, %c0_35] : memref<256x128xbf16, #tpu.memory_space<vmem>>, vector<256x128xbf16>
    %cst_36 = arith.constant dense<0.000000e+00> : vector<8x128xf32>
    %48 = tpu.matmul %46, %47, %cst_36 {dimension_numbers = #tpu.dot_dimension_numbers<[1], [0], [0], [1], [0, 0, 1, 1], [], []>} : vector<8x256xbf16>, vector<256x128xbf16>, vector<8x128xf32> -> vector<8x128xf32>
    %c0_37 = arith.constant 0 : index
    %c0_38 = arith.constant 0 : index
    %49 = vector.load %arg14[%c0_37, %c0_38] : memref<1x128xf32, #tpu.memory_space<vmem>>, vector<1x128xf32>
    %50 = vector.broadcast %49 : vector<1x128xf32> to vector<8x128xf32>
    %51 = arith.addf %48, %50 : vector<8x128xf32>
    %52 = vector.extract_strided_slice %51 {offsets = [0, 0], sizes = [8, 2], strides = [1, 1]} : vector<8x128xf32> to vector<8x2xf32>
    %c0_39 = arith.constant 0 : index
    %c0_40 = arith.constant 0 : index
    %53 = vector.load %arg15[%c0_39, %c0_40] : memref<8x2xf32, #tpu.memory_space<vmem>>, vector<8x2xf32>
    tpu.vector_store %arg15[%c0_39, %c0_40], %52 {strides = array<i32>} : memref<8x2xf32, #tpu.memory_space<vmem>>, vector<8x2xf32>,
    return
  }
  func.func @transform_0(%arg0: i32) -> (i32, i32) {
    %c0_i32 = arith.constant 0 : i32
    %c0_i32_0 = arith.constant 0 : i32
    return %arg0, %c0_i32 : i32, i32
  }
  func.func @transform_1(%arg0: i32) -> (i32, i32) {
    %c0_i32 = arith.constant 0 : i32
    %c0_i32_0 = arith.constant 0 : i32
    %c0_i32_1 = arith.constant 0 : i32
    return %c0_i32, %c0_i32_0 : i32, i32
  }
  func.func @transform_2(%arg0: i32) -> (i32, i32) {
    %c0_i32 = arith.constant 0 : i32
    %c0_i32_0 = arith.constant 0 : i32
    %c0_i32_1 = arith.constant 0 : i32
    return %c0_i32, %c0_i32_0 : i32, i32
  }
  func.func @transform_3(%arg0: i32) -> (i32, i32) {
    %c0_i32 = arith.constant 0 : i32
    %c0_i32_0 = arith.constant 0 : i32
    %c0_i32_1 = arith.constant 0 : i32
    return %c0_i32, %c0_i32_0 : i32, i32
  }
  func.func @transform_4(%arg0: i32) -> (i32, i32) {
    %c0_i32 = arith.constant 0 : i32
    %c0_i32_0 = arith.constant 0 : i32
    %c0_i32_1 = arith.constant 0 : i32
    return %c0_i32, %c0_i32_0 : i32, i32
  }
  func.func @transform_5(%arg0: i32) -> (i32, i32) {
    %c0_i32 = arith.constant 0 : i32
    %c0_i32_0 = arith.constant 0 : i32
    %c0_i32_1 = arith.constant 0 : i32
    return %c0_i32, %c0_i32_0 : i32, i32
  }
  func.func @transform_6(%arg0: i32) -> (i32, i32) {
    %c0_i32 = arith.constant 0 : i32
    %c0_i32_0 = arith.constant 0 : i32
    %c0_i32_1 = arith.constant 0 : i32
    return %c0_i32, %c0_i32_0 : i32, i32
  }
  func.func @transform_7(%arg0: i32) -> (i32, i32) {
    %c0_i32 = arith.constant 0 : i32
    %c0_i32_0 = arith.constant 0 : i32
    %c0_i32_1 = arith.constant 0 : i32
    return %c0_i32, %c0_i32_0 : i32, i32
  }
  func.func @transform_8(%arg0: i32) -> (i32, i32) {
    %c0_i32 = arith.constant 0 : i32
    %c0_i32_0 = arith.constant 0 : i32
    %c0_i32_1 = arith.constant 0 : i32
    return %c0_i32, %c0_i32_0 : i32, i32
  }
  func.func @transform_9(%arg0: i32) -> (i32, i32) {
    %c0_i32 = arith.constant 0 : i32
    %c0_i32_0 = arith.constant 0 : i32
    %c0_i32_1 = arith.constant 0 : i32
    return %c0_i32, %c0_i32_0 : i32, i32
  }
  func.func @transform_10(%arg0: i32) -> (i32, i32) {
    %c0_i32 = arith.constant 0 : i32
    %c0_i32_0 = arith.constant 0 : i32
    %c0_i32_1 = arith.constant 0 : i32
    return %c0_i32, %c0_i32_0 : i32, i32
  }
  func.func @transform_11(%arg0: i32) -> (i32, i32) {
    %c0_i32 = arith.constant 0 : i32
    %c0_i32_0 = arith.constant 0 : i32
    %c0_i32_1 = arith.constant 0 : i32
    return %c0_i32, %c0_i32_0 : i32, i32
  }
  func.func @transform_12(%arg0: i32) -> (i32, i32) {
    %c0_i32 = arith.constant 0 : i32
    %c0_i32_0 = arith.constant 0 : i32
    %c0_i32_1 = arith.constant 0 : i32
    return %c0_i32, %c0_i32_0 : i32, i32
  }
  func.func @transform_13(%arg0: i32) -> (i32, i32) {
    %c0_i32 = arith.constant 0 : i32
    %c0_i32_0 = arith.constant 0 : i32
    %c0_i32_1 = arith.constant 0 : i32
    return %c0_i32, %c0_i32_0 : i32, i32
  }
  func.func @transform_14(%arg0: i32) -> (i32, i32) {
    %c0_i32 = arith.constant 0 : i32
    %c0_i32_0 = arith.constant 0 : i32
    return %arg0, %c0_i32 : i32, i32
  }
}

</mosaic_0001>

<llo_original>
// kernel: deep_network_forward.1
$region0: #{deep_network_forward.1}
  #allocation0 [shape = 'u32[]', space=smem, size = 0x4, offset = 0x4, fixed_abs, tag = 'smem constant byte address 0x4 - core index']
  #allocation1 [shape = 'u32[72,128]{1,0:T(1,128)}', space=vmem, size = 0x9000, scoped, tag = 'internal scratch']
  %s0 = inlined_call_operand.vmem [shape: f32[8,32], index: 0, kind: input, shape index: {}]
  %s1 = inlined_call_operand.vmem [shape: bf16[32,64], index: 1, kind: input, shape index: {}]
  %s2 = inlined_call_operand.vmem [shape: f32[1,64], index: 2, kind: input, shape index: {}]
  %s3 = inlined_call_operand.hbm [shape: bf16[64,128], index: 3, kind: input, shape index: {}]
  %s4 = inlined_call_operand.hbm [shape: bf16[128,128], index: 4, kind: input, shape index: {}]
  %s5 = inlined_call_operand.hbm [shape: f32[1,128], index: 5, kind: input, shape index: {}]
  %s6 = inlined_call_operand.hbm [shape: bf16[128,256], index: 6, kind: input, shape index: {}]
  %s7 = inlined_call_operand.vmem [shape: f32[1,256], index: 7, kind: input, shape index: {}]
  %s8 = inlined_call_operand.hbm [shape: bf16[256,256], index: 8, kind: input, shape index: {}]
  %s9 = inlined_call_operand.vmem [shape: f32[1,256], index: 9, kind: input, shape index: {}]
  %s10 = inlined_call_operand.hbm [shape: bf16[256,256], index: 10, kind: input, shape index: {}]
  %s11 = inlined_call_operand.vmem [shape: f32[1,256], index: 11, kind: input, shape index: {}]
  %s12 = inlined_call_operand.hbm [shape: bf16[256,128], index: 12, kind: input, shape index: {}]
  %s13 = inlined_call_operand.hbm [shape: f32[1,128], index: 13, kind: input, shape index: {}]
  %s14 = inlined_call_operand.vmem [shape: f32[8,2], index: 14, kind: output, shape index: {}]
  %s15 = sld [smem:[#allocation0]]
  $region98: #{deep_network_forward.1} parent=0
    _
  %s17 = ssub.s32 1, %s15
  %s18 = scalar_select 0, %s17, %s15
  $region1: #{deep_network_forward.1} parent=0
    #allocation2 [shape = 'u8[16384]{0}', space=vmem, size = 0x4000, scoped, tag = 'input window, operand 3, single buffered']
    #allocation3 [shape = 's32[1]{0}', space=sflag, size = 0x4, scoped, tag = 'scoped memory for deep_network_forward.1']
    #allocation4 [shape = 'u8[32768]{0}', space=vmem, size = 0x8000, scoped, tag = 'input window, operand 4, single buffered']
    #allocation5 [shape = 's32[1]{0}', space=sflag, size = 0x4, scoped, tag = 'scoped memory for deep_network_forward.1']
    #allocation6 [shape = 'u8[512]{0}', space=vmem, size = 0x400, scoped, tag = 'input window, operand 5, single buffered']
    #allocation7 [shape = 'u8[65536]{0}', space=vmem, size = 0x10000, scoped, tag = 'input window, operand 6, single buffered']
    #allocation8 [shape = 's32[1]{0}', space=sflag, size = 0x4, scoped, tag = 'scoped memory for deep_network_forward.1']
    #allocation9 [shape = 'u8[131072]{0}', space=vmem, size = 0x20000, scoped, tag = 'input window, operand 8, single buffered']
    #allocation10 [shape = 'u8[131072]{0}', space=vmem, size = 0x20000, scoped, tag = 'input window, operand 10, single buffered']
    #allocation11 [shape = 's32[1]{0}', space=sflag, size = 0x4, scoped, tag = 'scoped memory for deep_network_forward.1']
    #allocation12 [shape = 'u8[65536]{0}', space=vmem, size = 0x10000, scoped, tag = 'input window, operand 12, single buffered']
    #allocation13 [shape = 'u8[512]{0}', space=vmem, size = 0x400, scoped, tag = 'input window, operand 13, single buffered']
    #allocation14 [shape = 's32[1]{0}', space=sflag, size = 0x4, scoped, tag = 'scoped memory for deep_network_forward.1']
    %19 = vsyncpa [#allocation3], 0
    %20 = vsyncpa [#allocation5], 0
    %21 = vsyncpa [#allocation8], 0
    %22 = vsyncpa [#allocation11], 0
    %23 = vsyncpa [#allocation14], 0
    // Predicated region
    $region2: #{deep_network_forward.1} parent=1 // pred_check
      _
    $region3: #{deep_network_forward.1} parent=1 // pred_check_branch
      %25 = sbr.rel (0) target = $region5
    $region4: #{deep_network_forward.1} parent=1 // pred_region
      _
    $region5: #{deep_network_forward.1} parent=1 // pred_fallthru
      _
    // Predicated region
    $region6: #{deep_network_forward.1} parent=1 // pred_check
      _
    $region7: #{deep_network_forward.1} parent=1 // pred_check_branch
      %27 = sbr.rel (0) target = $region9
    $region8: #{deep_network_forward.1} parent=1 // pred_region
      _
    $region9: #{deep_network_forward.1} parent=1 // pred_fallthru
      _
    // Predicated region
    $region10: #{deep_network_forward.1} parent=1 // pred_check
      _
    $region11: #{deep_network_forward.1} parent=1 // pred_check_branch
      %29 = sbr.rel (0) target = $region13
    $region12: #{deep_network_forward.1} parent=1 // pred_region
      _
    $region13: #{deep_network_forward.1} parent=1 // pred_fallthru
      _
    // Predicated region
    $region14: #{deep_network_forward.1} parent=1 // pred_check
      _
    $region15: #{deep_network_forward.1} parent=1 // pred_check_branch
      %31 = sbr.rel (0) target = $region17
    $region16: #{deep_network_forward.1} parent=1 // pred_region
      %33 = vsyncadd [#allocation3], 0
      %s34 = sshll.u32 %s3, 4
      %s35 = int_to_ptr.hbm [resolvable:$true] %s34
      %s36 = sshll.u32 [#allocation2], 4
      %s37 = int_to_ptr.vmem [resolvable:$true] %s36
      %42 = dma.hbm_to_vmem [thread:$0]  %s35, 512, %s37, [#allocation3], 64, 64, 4
    $region17: #{deep_network_forward.1} parent=1 // pred_fallthru
      _
    // Predicated region
    $region18: #{deep_network_forward.1} parent=1 // pred_check
      _
    $region19: #{deep_network_forward.1} parent=1 // pred_check_branch
      %44 = sbr.rel (0) target = $region21
    $region20: #{deep_network_forward.1} parent=1 // pred_region
      %46 = vsyncadd [#allocation5], 0
      %s47 = sshll.u32 %s4, 4
      %s48 = int_to_ptr.hbm [resolvable:$true] %s47
      %s49 = sshll.u32 [#allocation4], 4
      %s50 = int_to_ptr.vmem [resolvable:$true] %s49
      %55 = dma.hbm_to_vmem [thread:$0]  %s48, 1024, %s50, [#allocation5], 64, 64, 4
    $region21: #{deep_network_forward.1} parent=1 // pred_fallthru
      _
    // Predicated region
    $region22: #{deep_network_forward.1} parent=1 // pred_check
      _
    $region23: #{deep_network_forward.1} parent=1 // pred_check_branch
      %57 = sbr.rel (0) target = $region25
    $region24: #{deep_network_forward.1} parent=1 // pred_region
      %59 = vsyncadd [#allocation5], 0
      %s61 = sshll.u32 %s5, 4
      %s62 = int_to_ptr.hbm [resolvable:$true] %s61
      %s63 = sshll.u32 [#allocation6], 4
      %s64 = int_to_ptr.vmem [resolvable:$true] %s63
      %66 = dma.hbm_to_vmem [thread:$0]  %s62, 16, %s64, [#allocation5]
    $region25: #{deep_network_forward.1} parent=1 // pred_fallthru
      _
    // Predicated region
    $region26: #{deep_network_forward.1} parent=1 // pred_check
      _
    $region27: #{deep_network_forward.1} parent=1 // pred_check_branch
      %68 = sbr.rel (0) target = $region29
    $region28: #{deep_network_forward.1} parent=1 // pred_region
      %70 = vsyncadd [#allocation8], 0
      %s71 = sshll.u32 %s6, 4
      %s72 = int_to_ptr.hbm [resolvable:$true] %s71
      %s73 = sshll.u32 [#allocation7], 4
      %s74 = int_to_ptr.vmem [resolvable:$true] %s73
      %79 = dma.hbm_to_vmem [thread:$0]  %s72, 2048, %s74, [#allocation8], 128, 128, 8
    $region29: #{deep_network_forward.1} parent=1 // pred_fallthru
      _
    // Predicated region
    $region30: #{deep_network_forward.1} parent=1 // pred_check
      _
    $region31: #{deep_network_forward.1} parent=1 // pred_check_branch
      %81 = sbr.rel (0) target = $region33
    $region32: #{deep_network_forward.1} parent=1 // pred_region
      _
    $region33: #{deep_network_forward.1} parent=1 // pred_fallthru
      _
    // Predicated region
    $region34: #{deep_network_forward.1} parent=1 // pred_check
      _
    $region35: #{deep_network_forward.1} parent=1 // pred_check_branch
      %83 = sbr.rel (0) target = $region37
    $region36: #{deep_network_forward.1} parent=1 // pred_region
      %85 = vsyncadd [#allocation8], 0
      %s86 = sshll.u32 %s8, 4
      %s87 = int_to_ptr.hbm [resolvable:$true] %s86
      %s88 = sshll.u32 [#allocation9], 4
      %s89 = int_to_ptr.vmem [resolvable:$true] %s88
      %94 = dma.hbm_to_vmem [thread:$0]  %s87, 4096, %s89, [#allocation8], 128, 128, 8
    $region37: #{deep_network_forward.1} parent=1 // pred_fallthru
      _
    // Predicated region
    $region38: #{deep_network_forward.1} parent=1 // pred_check
      _
    $region39: #{deep_network_forward.1} parent=1 // pred_check_branch
      %96 = sbr.rel (0) target = $region41
    $region40: #{deep_network_forward.1} parent=1 // pred_region
      _
    $region41: #{deep_network_forward.1} parent=1 // pred_fallthru
      _
    // Predicated region
    $region42: #{deep_network_forward.1} parent=1 // pred_check
      _
    $region43: #{deep_network_forward.1} parent=1 // pred_check_branch
      %98 = sbr.rel (0) target = $region45
    $region44: #{deep_network_forward.1} parent=1 // pred_region
      %100 = vsyncadd [#allocation11], 0
      %s101 = sshll.u32 %s10, 4
      %s102 = int_to_ptr.hbm [resolvable:$true] %s101
      %s103 = sshll.u32 [#allocation10], 4
      %s104 = int_to_ptr.vmem [resolvable:$true] %s103
      %109 = dma.hbm_to_vmem [thread:$0]  %s102, 4096, %s104, [#allocation11], 128, 128, 8
    $region45: #{deep_network_forward.1} parent=1 // pred_fallthru
      _
    // Predicated region
    $region46: #{deep_network_forward.1} parent=1 // pred_check
      _
    $region47: #{deep_network_forward.1} parent=1 // pred_check_branch
      %111 = sbr.rel (0) target = $region49
    $region48: #{deep_network_forward.1} parent=1 // pred_region
      _
    $region49: #{deep_network_forward.1} parent=1 // pred_fallthru
      _
    // Predicated region
    $region50: #{deep_network_forward.1} parent=1 // pred_check
      _
    $region51: #{deep_network_forward.1} parent=1 // pred_check_branch
      %113 = sbr.rel (0) target = $region53
    $region52: #{deep_network_forward.1} parent=1 // pred_region
      %115 = vsyncadd [#allocation11], 0
      %s116 = sshll.u32 %s12, 4
      %s117 = int_to_ptr.hbm [resolvable:$true] %s116
      %s118 = sshll.u32 [#allocation12], 4
      %s119 = int_to_ptr.vmem [resolvable:$true] %s118
      %124 = dma.hbm_to_vmem [thread:$0]  %s117, 2048, %s119, [#allocation11], 64, 64, 4
    $region53: #{deep_network_forward.1} parent=1 // pred_fallthru
      _
    // Predicated region
    $region54: #{deep_network_forward.1} parent=1 // pred_check
      _
    $region55: #{deep_network_forward.1} parent=1 // pred_check_branch
      %126 = sbr.rel (0) target = $region57
    $region56: #{deep_network_forward.1} parent=1 // pred_region
      %128 = vsyncadd [#allocation14], 0
      %s130 = sshll.u32 %s13, 4
      %s131 = int_to_ptr.hbm [resolvable:$true] %s130
      %s132 = sshll.u32 [#allocation13], 4
      %s133 = int_to_ptr.vmem [resolvable:$true] %s132
      %135 = dma.hbm_to_vmem [thread:$0]  %s131, 16, %s133, [#allocation14]
    $region57: #{deep_network_forward.1} parent=1 // pred_fallthru
      _
    // Predicated region
    $region58: #{deep_network_forward.1} parent=1 // pred_check
      _
    $region59: #{deep_network_forward.1} parent=1 // pred_check_branch
      %137 = sbr.rel (0) target = $region61
    $region60: #{deep_network_forward.1} parent=1 // pred_region
      %139 = dma.done [#allocation3], 512
    $region61: #{deep_network_forward.1} parent=1 // pred_fallthru
      _
    // Predicated region
    $region62: #{deep_network_forward.1} parent=1 // pred_check
      _
    $region63: #{deep_network_forward.1} parent=1 // pred_check_branch
      %141 = sbr.rel (0) target = $region65
    $region64: #{deep_network_forward.1} parent=1 // pred_region
      %143 = dma.done [#allocation5], 1024
    $region65: #{deep_network_forward.1} parent=1 // pred_fallthru
      _
    // Predicated region
    $region66: #{deep_network_forward.1} parent=1 // pred_check
      _
    $region67: #{deep_network_forward.1} parent=1 // pred_check_branch
      %145 = sbr.rel (0) target = $region69
    $region68: #{deep_network_forward.1} parent=1 // pred_region
      %147 = dma.done [#allocation5], 16
    $region69: #{deep_network_forward.1} parent=1 // pred_fallthru
      _
    // Predicated region
    $region70: #{deep_network_forward.1} parent=1 // pred_check
      _
    $region71: #{deep_network_forward.1} parent=1 // pred_check_branch
      %149 = sbr.rel (0) target = $region73
    $region72: #{deep_network_forward.1} parent=1 // pred_region
      %151 = dma.done [#allocation8], 2048
    $region73: #{deep_network_forward.1} parent=1 // pred_fallthru
      _
    // Predicated region
    $region74: #{deep_network_forward.1} parent=1 // pred_check
      _
    $region75: #{deep_network_forward.1} parent=1 // pred_check_branch
      %153 = sbr.rel (0) target = $region77
    $region76: #{deep_network_forward.1} parent=1 // pred_region
      %155 = dma.done [#allocation8], 4096
    $region77: #{deep_network_forward.1} parent=1 // pred_fallthru
      _
    // Predicated region
    $region78: #{deep_network_forward.1} parent=1 // pred_check
      _
    $region79: #{deep_network_forward.1} parent=1 // pred_check_branch
      %157 = sbr.rel (0) target = $region81
    $region80: #{deep_network_forward.1} parent=1 // pred_region
      %159 = dma.done [#allocation11], 4096
    $region81: #{deep_network_forward.1} parent=1 // pred_fallthru
      _
    // Predicated region
    $region82: #{deep_network_forward.1} parent=1 // pred_check
      _
    $region83: #{deep_network_forward.1} parent=1 // pred_check_branch
      %161 = sbr.rel (0) target = $region85
    $region84: #{deep_network_forward.1} parent=1 // pred_region
      %163 = dma.done [#allocation11], 2048
    $region85: #{deep_network_forward.1} parent=1 // pred_fallthru
      _
    // Predicated region
    $region86: #{deep_network_forward.1} parent=1 // pred_check
      _
    $region87: #{deep_network_forward.1} parent=1 // pred_check_branch
      %165 = sbr.rel (0) target = $region89
    $region88: #{deep_network_forward.1} parent=1 // pred_region
      %167 = dma.done [#allocation14], 16
    $region89: #{deep_network_forward.1} parent=1 // pred_fallthru
      _
    %v169 = vld [vmem:[%s0] sm:$0xff]
    %v170 = vpack.c.bf16 %v169, %v169
    %v171 = vld [vmem:[%s1] sm:$0xf]
    %v172 = vld [vmem:[%s1 + $0x4] sm:$0xf]
    %v173 = vld [vmem:[%s1 + $0x8] sm:$0xf]
    %v174 = vld [vmem:[%s1 + $0xc] sm:$0xf]
    %v175 = vld [vmem:[%s2] sm:$0x1]
    %v177 = vperm.slane %v175, 0
    %v183 = vunpack.c.l.b16 %v171
    %v184 = vunpack.c.l.b16 %v172
    %v185 = vunpack.c.l.b16 %v173
    %v186 = vunpack.c.l.b16 %v174
    %v187 = vpack.c.b16 %v184, %v183
    %v188 = vpack.c.b16 %v186, %v185
    %vm191 = vcmask 261120
    %v193 = vsel %vm191, %v170, 0
    %195 = vmatpush.bf16.msra.mxu0 0
    %196 = vmatpush.bf16.msra.mxu0 0
    %197 = vmatpush.bf16.msra.mxu0 0
    %198 = vmatpush.bf16.msra.mxu0 0
    %199 = vmatpush.bf16.msra.mxu0 0
    %200 = vmatpush.bf16.msra.mxu0 0
    %201 = vmatpush.bf16.msra.mxu0 %v188
    %202 = vmatpush.bf16.msra.mxu0 %v187
    %203 = vmatmul.bf16.gmra.mxu0 %v193
    %v204 = vpop.f32.mrf.mxu0
    %v205 = vadd.f32 %v177, %v204
    %v206 = vpop.f32.mrf.mxu0
    %207 = vdwg.mxu0
    %v208 = vmax.f32 %v205, 0.0
    %v209 = vpack.c.bf16 %v208, %v208
    %v210 = vld [vmem:[#allocation2] sm:$0xf]
    %v211 = vld [vmem:[#allocation2 + $0x4] sm:$0xf]
    %v212 = vld [vmem:[#allocation2 + $0x8] sm:$0xf]
    %v213 = vld [vmem:[#allocation2 + $0xc] sm:$0xf]
    %v214 = vld [vmem:[#allocation2 + $0x10] sm:$0xf]
    %v215 = vld [vmem:[#allocation2 + $0x14] sm:$0xf]
    %v216 = vld [vmem:[#allocation2 + $0x18] sm:$0xf]
    %v217 = vld [vmem:[#allocation2 + $0x1c] sm:$0xf]
    %v226 = vunpack.c.l.b16 %v210
    %v227 = vunpack.c.l.b16 %v211
    %v228 = vunpack.c.l.b16 %v212
    %v229 = vunpack.c.l.b16 %v213
    %v230 = vunpack.c.l.b16 %v214
    %v231 = vunpack.c.l.b16 %v215
    %v232 = vunpack.c.l.b16 %v216
    %v233 = vunpack.c.l.b16 %v217
    %v234 = vpack.c.b16 %v227, %v226
    %v235 = vpack.c.b16 %v229, %v228
    %v236 = vpack.c.b16 %v231, %v230
    %v237 = vpack.c.b16 %v233, %v232
    %vm242 = vcmask 523264
    %v244 = vsel %vm242, %v209, 0
    %246 = vmatpush.bf16.msra.mxu0 0
    %247 = vmatpush.bf16.msra.mxu0 0
    %248 = vmatpush.bf16.msra.mxu0 0
    %249 = vmatpush.bf16.msra.mxu0 0
    %250 = vmatpush.bf16.msra.mxu0 %v237
    %251 = vmatpush.bf16.msra.mxu0 %v236
    %252 = vmatpush.bf16.msra.mxu0 %v235
    %253 = vmatpush.bf16.msra.mxu0 %v234
    %254 = vmatmul.bf16.gmra.mxu0 %v244
    %v255 = vpop.f32.mrf.mxu0
    %v256 = vadd.f32 0.0, %v255
    %v257 = vpop.f32.mrf.mxu0
    %258 = vdwg.mxu0
    %v259 = vmax.f32 %v256, 0.0
    %v260 = vpack.c.bf16 %v259, %v259
    %v261 = vld [vmem:[#allocation4] sm:$0xf]
    %v262 = vld [vmem:[#allocation4 + $0x4] sm:$0xf]
    %v263 = vld [vmem:[#allocation4 + $0x8] sm:$0xf]
    %v264 = vld [vmem:[#allocation4 + $0xc] sm:$0xf]
    %v265 = vld [vmem:[#allocation4 + $0x10] sm:$0xf]
    %v266 = vld [vmem:[#allocation4 + $0x14] sm:$0xf]
    %v267 = vld [vmem:[#allocation4 + $0x18] sm:$0xf]
    %v268 = vld [vmem:[#allocation4 + $0x1c] sm:$0xf]
    %v269 = vld [vmem:[#allocation4 + $0x20] sm:$0xf]
    %v270 = vld [vmem:[#allocation4 + $0x24] sm:$0xf]
    %v271 = vld [vmem:[#allocation4 + $0x28] sm:$0xf]
    %v272 = vld [vmem:[#allocation4 + $0x2c] sm:$0xf]
    %v273 = vld [vmem:[#allocation4 + $0x30] sm:$0xf]
    %v274 = vld [vmem:[#allocation4 + $0x34] sm:$0xf]
    %v275 = vld [vmem:[#allocation4 + $0x38] sm:$0xf]
    %v276 = vld [vmem:[#allocation4 + $0x3c] sm:$0xf]
    %v277 = vld [vmem:[#allocation6] sm:$0x1]
    %v279 = vperm.slane %v277, 0
    %v297 = vunpack.c.l.b16 %v261
    %v298 = vunpack.c.l.b16 %v262
    %v299 = vunpack.c.l.b16 %v263
    %v300 = vunpack.c.l.b16 %v264
    %v301 = vunpack.c.l.b16 %v265
    %v302 = vunpack.c.l.b16 %v266
    %v303 = vunpack.c.l.b16 %v267
    %v304 = vunpack.c.l.b16 %v268
    %v305 = vunpack.c.l.b16 %v269
    %v306 = vunpack.c.l.b16 %v270
    %v307 = vunpack.c.l.b16 %v271
    %v308 = vunpack.c.l.b16 %v272
    %v309 = vunpack.c.l.b16 %v273
    %v310 = vunpack.c.l.b16 %v274
    %v311 = vunpack.c.l.b16 %v275
    %v312 = vunpack.c.l.b16 %v276
    %v313 = vpack.c.b16 %v298, %v297
    %v314 = vpack.c.b16 %v300, %v299
    %v315 = vpack.c.b16 %v302, %v301
    %v316 = vpack.c.b16 %v304, %v303
    %v317 = vpack.c.b16 %v306, %v305
    %v318 = vpack.c.b16 %v308, %v307
    %v319 = vpack.c.b16 %v310, %v309
    %v320 = vpack.c.b16 %v312, %v311
    %329 = vmatpush.bf16.msra.mxu0 %v320
    %330 = vmatpush.bf16.msra.mxu0 %v319
    %331 = vmatpush.bf16.msra.mxu0 %v318
    %332 = vmatpush.bf16.msra.mxu0 %v317
    %333 = vmatpush.bf16.msra.mxu0 %v316
    %334 = vmatpush.bf16.msra.mxu0 %v315
    %335 = vmatpush.bf16.msra.mxu0 %v314
    %336 = vmatpush.bf16.msra.mxu0 %v313
    %337 = vmatmul.bf16.gmra.mxu0 %v260
    %v338 = vpop.f32.mrf.mxu0
    %v339 = vadd.f32 %v279, %v338
    %v340 = vpop.f32.mrf.mxu0
    %341 = vdwg.mxu0
    %v342 = vmax.f32 %v339, 0.0
    %v343 = vpack.c.bf16 %v342, %v342
    %v344 = vld [vmem:[#allocation7] sm:$0xff]
    %v345 = vld [vmem:[#allocation7 + $0x8] sm:$0xff]
    %v346 = vld [vmem:[#allocation7 + $0x10] sm:$0xff]
    %v347 = vld [vmem:[#allocation7 + $0x18] sm:$0xff]
    %v348 = vld [vmem:[#allocation7 + $0x20] sm:$0xff]
    %v349 = vld [vmem:[#allocation7 + $0x28] sm:$0xff]
    %v350 = vld [vmem:[#allocation7 + $0x30] sm:$0xff]
    %v351 = vld [vmem:[#allocation7 + $0x38] sm:$0xff]
    %v352 = vld [vmem:[#allocation7 + $0x40] sm:$0xff]
    %v353 = vld [vmem:[#allocation7 + $0x48] sm:$0xff]
    %v354 = vld [vmem:[#allocation7 + $0x50] sm:$0xff]
    %v355 = vld [vmem:[#allocation7 + $0x58] sm:$0xff]
    %v356 = vld [vmem:[#allocation7 + $0x60] sm:$0xff]
    %v357 = vld [vmem:[#allocation7 + $0x68] sm:$0xff]
    %v358 = vld [vmem:[#allocation7 + $0x70] sm:$0xff]
    %v359 = vld [vmem:[#allocation7 + $0x78] sm:$0xff]
    %v360 = vld [vmem:[%s7] sm:$0x3]
    %v362 = vperm.slane %v360, 0
    %v363 = vperm.slane %v360, 1
    %v382 = vunpack.c.l.b16 %v344
    %v383 = vunpack.c.h.b16 %v344
    %v384 = vunpack.c.l.b16 %v345
    %v385 = vunpack.c.h.b16 %v345
    %v386 = vunpack.c.l.b16 %v346
    %v387 = vunpack.c.h.b16 %v346
    %v388 = vunpack.c.l.b16 %v347
    %v389 = vunpack.c.h.b16 %v347
    %v390 = vunpack.c.l.b16 %v348
    %v391 = vunpack.c.h.b16 %v348
    %v392 = vunpack.c.l.b16 %v349
    %v393 = vunpack.c.h.b16 %v349
    %v394 = vunpack.c.l.b16 %v350
    %v395 = vunpack.c.h.b16 %v350
    %v396 = vunpack.c.l.b16 %v351
    %v397 = vunpack.c.h.b16 %v351
    %v398 = vunpack.c.l.b16 %v352
    %v399 = vunpack.c.h.b16 %v352
    %v400 = vunpack.c.l.b16 %v353
    %v401 = vunpack.c.h.b16 %v353
    %v402 = vunpack.c.l.b16 %v354
    %v403 = vunpack.c.h.b16 %v354
    %v404 = vunpack.c.l.b16 %v355
    %v405 = vunpack.c.h.b16 %v355
    %v406 = vunpack.c.l.b16 %v356
    %v407 = vunpack.c.h.b16 %v356
    %v408 = vunpack.c.l.b16 %v357
    %v409 = vunpack.c.h.b16 %v357
    %v410 = vunpack.c.l.b16 %v358
    %v411 = vunpack.c.h.b16 %v358
    %v412 = vunpack.c.l.b16 %v359
    %v413 = vunpack.c.h.b16 %v359
    %v414 = vpack.c.b16 %v384, %v382
    %v415 = vpack.c.b16 %v385, %v383
    %v416 = vpack.c.b16 %v388, %v386
    %v417 = vpack.c.b16 %v389, %v387
    %v418 = vpack.c.b16 %v392, %v390
    %v419 = vpack.c.b16 %v393, %v391
    %v420 = vpack.c.b16 %v396, %v394
    %v421 = vpack.c.b16 %v397, %v395
    %v422 = vpack.c.b16 %v400, %v398
    %v423 = vpack.c.b16 %v401, %v399
    %v424 = vpack.c.b16 %v404, %v402
    %v425 = vpack.c.b16 %v405, %v403
    %v426 = vpack.c.b16 %v408, %v406
    %v427 = vpack.c.b16 %v409, %v407
    %v428 = vpack.c.b16 %v412, %v410
    %v429 = vpack.c.b16 %v413, %v411
    %446 = vmatpush.bf16.msra.mxu0 %v428
    %447 = vmatpush.bf16.msra.mxu0 %v426
    %448 = vmatpush.bf16.msra.mxu0 %v424
    %449 = vmatpush.bf16.msra.mxu0 %v422
    %450 = vmatpush.bf16.msra.mxu0 %v420
    %451 = vmatpush.bf16.msra.mxu0 %v418
    %452 = vmatpush.bf16.msra.mxu0 %v416
    %453 = vmatpush.bf16.msra.mxu0 %v414
    %454 = vmatmul.bf16.gmra.mxu0 %v343
    %v455 = vpop.f32.mrf.mxu0
    %v456 = vadd.f32 %v362, %v455
    %v457 = vpop.f32.mrf.mxu0
    %458 = vdwg.mxu0
    %459 = vmatpush.bf16.msra.mxu0 %v429
    %460 = vmatpush.bf16.msra.mxu0 %v427
    %461 = vmatpush.bf16.msra.mxu0 %v425
    %462 = vmatpush.bf16.msra.mxu0 %v423
    %463 = vmatpush.bf16.msra.mxu0 %v421
    %464 = vmatpush.bf16.msra.mxu0 %v419
    %465 = vmatpush.bf16.msra.mxu0 %v417
    %466 = vmatpush.bf16.msra.mxu0 %v415
    %467 = vmatmul.bf16.gmra.mxu0 %v343
    %v468 = vpop.f32.mrf.mxu0
    %v469 = vadd.f32 %v363, %v468
    %v470 = vpop.f32.mrf.mxu0
    %471 = vdwg.mxu0
    %v472 = vmax.f32 %v456, 0.0
    %v473 = vmax.f32 %v469, 0.0
    %v474 = vpack.c.bf16 %v472, %v472
    %v475 = vpack.c.bf16 %v473, %v473
    %v476 = vld [vmem:[#allocation9] sm:$0xff]
    %v477 = vld [vmem:[#allocation9 + $0x8] sm:$0xff]
    %v478 = vld [vmem:[#allocation9 + $0x10] sm:$0xff]
    %v479 = vld [vmem:[#allocation9 + $0x18] sm:$0xff]
    %v480 = vld [vmem:[#allocation9 + $0x20] sm:$0xff]
    %v481 = vld [vmem:[#allocation9 + $0x28] sm:$0xff]
    %v482 = vld [vmem:[#allocation9 + $0x30] sm:$0xff]
    %v483 = vld [vmem:[#allocation9 + $0x38] sm:$0xff]
    %v484 = vld [vmem:[#allocation9 + $0x40] sm:$0xff]
    %v485 = vld [vmem:[#allocation9 + $0x48] sm:$0xff]
    %v486 = vld [vmem:[#allocation9 + $0x50] sm:$0xff]
    %v487 = vld [vmem:[#allocation9 + $0x58] sm:$0xff]
    %v488 = vld [vmem:[#allocation9 + $0x60] sm:$0xff]
    %v489 = vld [vmem:[#allocation9 + $0x68] sm:$0xff]
    %v490 = vld [vmem:[#allocation9 + $0x70] sm:$0xff]
    %v491 = vld [vmem:[#allocation9 + $0x78] sm:$0xff]
    %v492 = vld [vmem:[#allocation9 + $0x80] sm:$0xff]
    %v493 = vld [vmem:[#allocation9 + $0x88] sm:$0xff]
    %v494 = vld [vmem:[#allocation9 + $0x90] sm:$0xff]
    %v495 = vld [vmem:[#allocation9 + $0x98] sm:$0xff]
    %v496 = vld [vmem:[#allocation9 + $0xa0] sm:$0xff]
    %v497 = vld [vmem:[#allocation9 + $0xa8] sm:$0xff]
    %v498 = vld [vmem:[#allocation9 + $0xb0] sm:$0xff]
    %v499 = vld [vmem:[#allocation9 + $0xb8] sm:$0xff]
    %v500 = vld [vmem:[#allocation9 + $0xc0] sm:$0xff]
    %v501 = vld [vmem:[#allocation9 + $0xc8] sm:$0xff]
    %v502 = vld [vmem:[#allocation9 + $0xd0] sm:$0xff]
    %v503 = vld [vmem:[#allocation9 + $0xd8] sm:$0xff]
    %v504 = vld [vmem:[#allocation9 + $0xe0] sm:$0xff]
    %v505 = vld [vmem:[#allocation9 + $0xe8] sm:$0xff]
    %v506 = vld [vmem:[#allocation9 + $0xf0] sm:$0xff]
    %v507 = vld [vmem:[#allocation9 + $0xf8] sm:$0xff]
    %v508 = vld [vmem:[%s9] sm:$0x3]
    %v510 = vperm.slane %v508, 0
    %v511 = vperm.slane %v508, 1
    %v546 = vunpack.c.l.b16 %v476
    %v547 = vunpack.c.h.b16 %v476
    %v548 = vunpack.c.l.b16 %v477
    %v549 = vunpack.c.h.b16 %v477
    %v550 = vunpack.c.l.b16 %v478
    %v551 = vunpack.c.h.b16 %v478
    %v552 = vunpack.c.l.b16 %v479
    %v553 = vunpack.c.h.b16 %v479
    %v554 = vunpack.c.l.b16 %v480
    %v555 = vunpack.c.h.b16 %v480
    %v556 = vunpack.c.l.b16 %v481
    %v557 = vunpack.c.h.b16 %v481
    %v558 = vunpack.c.l.b16 %v482
    %v559 = vunpack.c.h.b16 %v482
    %v560 = vunpack.c.l.b16 %v483
    %v561 = vunpack.c.h.b16 %v483
    %v562 = vunpack.c.l.b16 %v484
    %v563 = vunpack.c.h.b16 %v484
    %v564 = vunpack.c.l.b16 %v485
    %v565 = vunpack.c.h.b16 %v485
    %v566 = vunpack.c.l.b16 %v486
    %v567 = vunpack.c.h.b16 %v486
    %v568 = vunpack.c.l.b16 %v487
    %v569 = vunpack.c.h.b16 %v487
    %v570 = vunpack.c.l.b16 %v488
    %v571 = vunpack.c.h.b16 %v488
    %v572 = vunpack.c.l.b16 %v489
    %v573 = vunpack.c.h.b16 %v489
    %v574 = vunpack.c.l.b16 %v490
    %v575 = vunpack.c.h.b16 %v490
    %v576 = vunpack.c.l.b16 %v491
    %v577 = vunpack.c.h.b16 %v491
    %v578 = vunpack.c.l.b16 %v492
    %v579 = vunpack.c.h.b16 %v492
    %v580 = vunpack.c.l.b16 %v493
    %v581 = vunpack.c.h.b16 %v493
    %v582 = vunpack.c.l.b16 %v494
    %v583 = vunpack.c.h.b16 %v494
    %v584 = vunpack.c.l.b16 %v495
    %v585 = vunpack.c.h.b16 %v495
    %v586 = vunpack.c.l.b16 %v496
    %v587 = vunpack.c.h.b16 %v496
    %v588 = vunpack.c.l.b16 %v497
    %v589 = vunpack.c.h.b16 %v497
    %v590 = vunpack.c.l.b16 %v498
    %v591 = vunpack.c.h.b16 %v498
    %v592 = vunpack.c.l.b16 %v499
    %v593 = vunpack.c.h.b16 %v499
    %v594 = vunpack.c.l.b16 %v500
    %v595 = vunpack.c.h.b16 %v500
    %v596 = vunpack.c.l.b16 %v501
    %v597 = vunpack.c.h.b16 %v501
    %v598 = vunpack.c.l.b16 %v502
    %v599 = vunpack.c.h.b16 %v502
    %v600 = vunpack.c.l.b16 %v503
    %v601 = vunpack.c.h.b16 %v503
    %v602 = vunpack.c.l.b16 %v504
    %v603 = vunpack.c.h.b16 %v504
    %v604 = vunpack.c.l.b16 %v505
    %v605 = vunpack.c.h.b16 %v505
    %v606 = vunpack.c.l.b16 %v506
    %v607 = vunpack.c.h.b16 %v506
    %v608 = vunpack.c.l.b16 %v507
    %v609 = vunpack.c.h.b16 %v507
    %v610 = vpack.c.b16 %v548, %v546
    %v611 = vpack.c.b16 %v549, %v547
    %v612 = vpack.c.b16 %v552, %v550
    %v613 = vpack.c.b16 %v553, %v551
    %v614 = vpack.c.b16 %v556, %v554
    %v615 = vpack.c.b16 %v557, %v555
    %v616 = vpack.c.b16 %v560, %v558
    %v617 = vpack.c.b16 %v561, %v559
    %v618 = vpack.c.b16 %v564, %v562
    %v619 = vpack.c.b16 %v565, %v563
    %v620 = vpack.c.b16 %v568, %v566
    %v621 = vpack.c.b16 %v569, %v567
    %v622 = vpack.c.b16 %v572, %v570
    %v623 = vpack.c.b16 %v573, %v571
    %v624 = vpack.c.b16 %v576, %v574
    %v625 = vpack.c.b16 %v577, %v575
    %v626 = vpack.c.b16 %v580, %v578
    %v627 = vpack.c.b16 %v581, %v579
    %v628 = vpack.c.b16 %v584, %v582
    %v629 = vpack.c.b16 %v585, %v583
    %v630 = vpack.c.b16 %v588, %v586
    %v631 = vpack.c.b16 %v589, %v587
    %v632 = vpack.c.b16 %v592, %v590
    %v633 = vpack.c.b16 %v593, %v591
    %v634 = vpack.c.b16 %v596, %v594
    %v635 = vpack.c.b16 %v597, %v595
    %v636 = vpack.c.b16 %v600, %v598
    %v637 = vpack.c.b16 %v601, %v599
    %v638 = vpack.c.b16 %v604, %v602
    %v639 = vpack.c.b16 %v605, %v603
    %v640 = vpack.c.b16 %v608, %v606
    %v641 = vpack.c.b16 %v609, %v607
    %674 = vmatpush.bf16.msra.mxu0 %v624
    %675 = vmatpush.bf16.msra.mxu0 %v622
    %676 = vmatpush.bf16.msra.mxu0 %v620
    %677 = vmatpush.bf16.msra.mxu0 %v618
    %678 = vmatpush.bf16.msra.mxu0 %v616
    %679 = vmatpush.bf16.msra.mxu0 %v614
    %680 = vmatpush.bf16.msra.mxu0 %v612
    %681 = vmatpush.bf16.msra.mxu0 %v610
    %682 = vmatmul.bf16.gmra.mxu0 %v474
    %v683 = vpop.f32.mrf.mxu0
    %v684 = vadd.f32 %v510, %v683
    %v685 = vpop.f32.mrf.mxu0
    %686 = vdwg.mxu0
    %687 = vmatpush.bf16.msra.mxu0 %v640
    %688 = vmatpush.bf16.msra.mxu0 %v638
    %689 = vmatpush.bf16.msra.mxu0 %v636
    %690 = vmatpush.bf16.msra.mxu0 %v634
    %691 = vmatpush.bf16.msra.mxu0 %v632
    %692 = vmatpush.bf16.msra.mxu0 %v630
    %693 = vmatpush.bf16.msra.mxu0 %v628
    %694 = vmatpush.bf16.msra.mxu0 %v626
    %695 = vmatmul.bf16.gmra.mxu0 %v475
    %v696 = vpop.f32.mrf.mxu0
    %v697 = vadd.f32 %v684, %v696
    %v698 = vpop.f32.mrf.mxu0
    %699 = vdwg.mxu0
    %700 = vmatpush.bf16.msra.mxu0 %v625
    %701 = vmatpush.bf16.msra.mxu0 %v623
    %702 = vmatpush.bf16.msra.mxu0 %v621
    %703 = vmatpush.bf16.msra.mxu0 %v619
    %704 = vmatpush.bf16.msra.mxu0 %v617
    %705 = vmatpush.bf16.msra.mxu0 %v615
    %706 = vmatpush.bf16.msra.mxu0 %v613
    %707 = vmatpush.bf16.msra.mxu0 %v611
    %708 = vmatmul.bf16.gmra.mxu0 %v474
    %v709 = vpop.f32.mrf.mxu0
    %v710 = vadd.f32 %v511, %v709
    %v711 = vpop.f32.mrf.mxu0
    %712 = vdwg.mxu0
    %713 = vmatpush.bf16.msra.mxu0 %v641
    %714 = vmatpush.bf16.msra.mxu0 %v639
    %715 = vmatpush.bf16.msra.mxu0 %v637
    %716 = vmatpush.bf16.msra.mxu0 %v635
    %717 = vmatpush.bf16.msra.mxu0 %v633
    %718 = vmatpush.bf16.msra.mxu0 %v631
    %719 = vmatpush.bf16.msra.mxu0 %v629
    %720 = vmatpush.bf16.msra.mxu0 %v627
    %721 = vmatmul.bf16.gmra.mxu0 %v475
    %v722 = vpop.f32.mrf.mxu0
    %v723 = vadd.f32 %v710, %v722
    %v724 = vpop.f32.mrf.mxu0
    %725 = vdwg.mxu0
    %v726 = vmax.f32 %v697, 0.0
    %v727 = vmax.f32 %v723, 0.0
    %v728 = vpack.c.bf16 %v726, %v726
    %v729 = vpack.c.bf16 %v727, %v727
    %v730 = vld [vmem:[#allocation10] sm:$0xff]
    %v731 = vld [vmem:[#allocation10 + $0x8] sm:$0xff]
    %v732 = vld [vmem:[#allocation10 + $0x10] sm:$0xff]
    %v733 = vld [vmem:[#allocation10 + $0x18] sm:$0xff]
    %v734 = vld [vmem:[#allocation10 + $0x20] sm:$0xff]
    %v735 = vld [vmem:[#allocation10 + $0x28] sm:$0xff]
    %v736 = vld [vmem:[#allocation10 + $0x30] sm:$0xff]
    %v737 = vld [vmem:[#allocation10 + $0x38] sm:$0xff]
    %v738 = vld [vmem:[#allocation10 + $0x40] sm:$0xff]
    %v739 = vld [vmem:[#allocation10 + $0x48] sm:$0xff]
    %v740 = vld [vmem:[#allocation10 + $0x50] sm:$0xff]
    %v741 = vld [vmem:[#allocation10 + $0x58] sm:$0xff]
    %v742 = vld [vmem:[#allocation10 + $0x60] sm:$0xff]
    %v743 = vld [vmem:[#allocation10 + $0x68] sm:$0xff]
    %v744 = vld [vmem:[#allocation10 + $0x70] sm:$0xff]
    %v745 = vld [vmem:[#allocation10 + $0x78] sm:$0xff]
    %v746 = vld [vmem:[#allocation10 + $0x80] sm:$0xff]
    %v747 = vld [vmem:[#allocation10 + $0x88] sm:$0xff]
    %v748 = vld [vmem:[#allocation10 + $0x90] sm:$0xff]
    %v749 = vld [vmem:[#allocation10 + $0x98] sm:$0xff]
    %v750 = vld [vmem:[#allocation10 + $0xa0] sm:$0xff]
    %v751 = vld [vmem:[#allocation10 + $0xa8] sm:$0xff]
    %v752 = vld [vmem:[#allocation10 + $0xb0] sm:$0xff]
    %v753 = vld [vmem:[#allocation10 + $0xb8] sm:$0xff]
    %v754 = vld [vmem:[#allocation10 + $0xc0] sm:$0xff]
    %v755 = vld [vmem:[#allocation10 + $0xc8] sm:$0xff]
    %v756 = vld [vmem:[#allocation10 + $0xd0] sm:$0xff]
    %v757 = vld [vmem:[#allocation10 + $0xd8] sm:$0xff]
    %v758 = vld [vmem:[#allocation10 + $0xe0] sm:$0xff]
    %v759 = vld [vmem:[#allocation10 + $0xe8] sm:$0xff]
    %v760 = vld [vmem:[#allocation10 + $0xf0] sm:$0xff]
    %v761 = vld [vmem:[#allocation10 + $0xf8] sm:$0xff]
    %v762 = vld [vmem:[%s11] sm:$0x3]
    %v764 = vperm.slane %v762, 0
    %v765 = vperm.slane %v762, 1
    %v800 = vunpack.c.l.b16 %v730
    %v801 = vunpack.c.h.b16 %v730
    %v802 = vunpack.c.l.b16 %v731
    %v803 = vunpack.c.h.b16 %v731
    %v804 = vunpack.c.l.b16 %v732
    %v805 = vunpack.c.h.b16 %v732
    %v806 = vunpack.c.l.b16 %v733
    %v807 = vunpack.c.h.b16 %v733
    %v808 = vunpack.c.l.b16 %v734
    %v809 = vunpack.c.h.b16 %v734
    %v810 = vunpack.c.l.b16 %v735
    %v811 = vunpack.c.h.b16 %v735
    %v812 = vunpack.c.l.b16 %v736
    %v813 = vunpack.c.h.b16 %v736
    %v814 = vunpack.c.l.b16 %v737
    %v815 = vunpack.c.h.b16 %v737
    %v816 = vunpack.c.l.b16 %v738
    %v817 = vunpack.c.h.b16 %v738
    %v818 = vunpack.c.l.b16 %v739
    %v819 = vunpack.c.h.b16 %v739
    %v820 = vunpack.c.l.b16 %v740
    %v821 = vunpack.c.h.b16 %v740
    %v822 = vunpack.c.l.b16 %v741
    %v823 = vunpack.c.h.b16 %v741
    %v824 = vunpack.c.l.b16 %v742
    %v825 = vunpack.c.h.b16 %v742
    %v826 = vunpack.c.l.b16 %v743
    %v827 = vunpack.c.h.b16 %v743
    %v828 = vunpack.c.l.b16 %v744
    %v829 = vunpack.c.h.b16 %v744
    %v830 = vunpack.c.l.b16 %v745
    %v831 = vunpack.c.h.b16 %v745
    %v832 = vunpack.c.l.b16 %v746
    %v833 = vunpack.c.h.b16 %v746
    %v834 = vunpack.c.l.b16 %v747
    %v835 = vunpack.c.h.b16 %v747
    %v836 = vunpack.c.l.b16 %v748
    %v837 = vunpack.c.h.b16 %v748
    %v838 = vunpack.c.l.b16 %v749
    %v839 = vunpack.c.h.b16 %v749
    %v840 = vunpack.c.l.b16 %v750
    %v841 = vunpack.c.h.b16 %v750
    %v842 = vunpack.c.l.b16 %v751
    %v843 = vunpack.c.h.b16 %v751
    %v844 = vunpack.c.l.b16 %v752
    %v845 = vunpack.c.h.b16 %v752
    %v846 = vunpack.c.l.b16 %v753
    %v847 = vunpack.c.h.b16 %v753
    %v848 = vunpack.c.l.b16 %v754
    %v849 = vunpack.c.h.b16 %v754
    %v850 = vunpack.c.l.b16 %v755
    %v851 = vunpack.c.h.b16 %v755
    %v852 = vunpack.c.l.b16 %v756
    %v853 = vunpack.c.h.b16 %v756
    %v854 = vunpack.c.l.b16 %v757
    %v855 = vunpack.c.h.b16 %v757
    %v856 = vunpack.c.l.b16 %v758
    %v857 = vunpack.c.h.b16 %v758
    %v858 = vunpack.c.l.b16 %v759
    %v859 = vunpack.c.h.b16 %v759
    %v860 = vunpack.c.l.b16 %v760
    %v861 = vunpack.c.h.b16 %v760
    %v862 = vunpack.c.l.b16 %v761
    %v863 = vunpack.c.h.b16 %v761
    %v864 = vpack.c.b16 %v802, %v800
    %v865 = vpack.c.b16 %v803, %v801
    %v866 = vpack.c.b16 %v806, %v804
    %v867 = vpack.c.b16 %v807, %v805
    %v868 = vpack.c.b16 %v810, %v808
    %v869 = vpack.c.b16 %v811, %v809
    %v870 = vpack.c.b16 %v814, %v812
    %v871 = vpack.c.b16 %v815, %v813
    %v872 = vpack.c.b16 %v818, %v816
    %v873 = vpack.c.b16 %v819, %v817
    %v874 = vpack.c.b16 %v822, %v820
    %v875 = vpack.c.b16 %v823, %v821
    %v876 = vpack.c.b16 %v826, %v824
    %v877 = vpack.c.b16 %v827, %v825
    %v878 = vpack.c.b16 %v830, %v828
    %v879 = vpack.c.b16 %v831, %v829
    %v880 = vpack.c.b16 %v834, %v832
    %v881 = vpack.c.b16 %v835, %v833
    %v882 = vpack.c.b16 %v838, %v836
    %v883 = vpack.c.b16 %v839, %v837
    %v884 = vpack.c.b16 %v842, %v840
    %v885 = vpack.c.b16 %v843, %v841
    %v886 = vpack.c.b16 %v846, %v844
    %v887 = vpack.c.b16 %v847, %v845
    %v888 = vpack.c.b16 %v850, %v848
    %v889 = vpack.c.b16 %v851, %v849
    %v890 = vpack.c.b16 %v854, %v852
    %v891 = vpack.c.b16 %v855, %v853
    %v892 = vpack.c.b16 %v858, %v856
    %v893 = vpack.c.b16 %v859, %v857
    %v894 = vpack.c.b16 %v862, %v860
    %v895 = vpack.c.b16 %v863, %v861
    %928 = vmatpush.bf16.msra.mxu0 %v878
    %929 = vmatpush.bf16.msra.mxu0 %v876
    %930 = vmatpush.bf16.msra.mxu0 %v874
    %931 = vmatpush.bf16.msra.mxu0 %v872
    %932 = vmatpush.bf16.msra.mxu0 %v870
    %933 = vmatpush.bf16.msra.mxu0 %v868
    %934 = vmatpush.bf16.msra.mxu0 %v866
    %935 = vmatpush.bf16.msra.mxu0 %v864
    %936 = vmatmul.bf16.gmra.mxu0 %v728
    %v937 = vpop.f32.mrf.mxu0
    %v938 = vadd.f32 %v764, %v937
    %v939 = vpop.f32.mrf.mxu0
    %940 = vdwg.mxu0
    %941 = vmatpush.bf16.msra.mxu0 %v894
    %942 = vmatpush.bf16.msra.mxu0 %v892
    %943 = vmatpush.bf16.msra.mxu0 %v890
    %944 = vmatpush.bf16.msra.mxu0 %v888
    %945 = vmatpush.bf16.msra.mxu0 %v886
    %946 = vmatpush.bf16.msra.mxu0 %v884
    %947 = vmatpush.bf16.msra.mxu0 %v882
    %948 = vmatpush.bf16.msra.mxu0 %v880
    %949 = vmatmul.bf16.gmra.mxu0 %v729
    %v950 = vpop.f32.mrf.mxu0
    %v951 = vadd.f32 %v938, %v950
    %v952 = vpop.f32.mrf.mxu0
    %953 = vdwg.mxu0
    %954 = vmatpush.bf16.msra.mxu0 %v879
    %955 = vmatpush.bf16.msra.mxu0 %v877
    %956 = vmatpush.bf16.msra.mxu0 %v875
    %957 = vmatpush.bf16.msra.mxu0 %v873
    %958 = vmatpush.bf16.msra.mxu0 %v871
    %959 = vmatpush.bf16.msra.mxu0 %v869
    %960 = vmatpush.bf16.msra.mxu0 %v867
    %961 = vmatpush.bf16.msra.mxu0 %v865
    %962 = vmatmul.bf16.gmra.mxu0 %v728
    %v963 = vpop.f32.mrf.mxu0
    %v964 = vadd.f32 %v765, %v963
    %v965 = vpop.f32.mrf.mxu0
    %966 = vdwg.mxu0
    %967 = vmatpush.bf16.msra.mxu0 %v895
    %968 = vmatpush.bf16.msra.mxu0 %v893
    %969 = vmatpush.bf16.msra.mxu0 %v891
    %970 = vmatpush.bf16.msra.mxu0 %v889
    %971 = vmatpush.bf16.msra.mxu0 %v887
    %972 = vmatpush.bf16.msra.mxu0 %v885
    %973 = vmatpush.bf16.msra.mxu0 %v883
    %974 = vmatpush.bf16.msra.mxu0 %v881
    %975 = vmatmul.bf16.gmra.mxu0 %v729
    %v976 = vpop.f32.mrf.mxu0
    %v977 = vadd.f32 %v964, %v976
    %v978 = vpop.f32.mrf.mxu0
    %979 = vdwg.mxu0
    %v980 = vmax.f32 %v951, 0.0
    %v981 = vmax.f32 %v977, 0.0
    %v982 = vpack.c.bf16 %v980, %v980
    %v983 = vpack.c.bf16 %v981, %v981
    %v984 = vld [vmem:[#allocation12] sm:$0xf]
    %v985 = vld [vmem:[#allocation12 + $0x4] sm:$0xf]
    %v986 = vld [vmem:[#allocation12 + $0x8] sm:$0xf]
    %v987 = vld [vmem:[#allocation12 + $0xc] sm:$0xf]
    %v988 = vld [vmem:[#allocation12 + $0x10] sm:$0xf]
    %v989 = vld [vmem:[#allocation12 + $0x14] sm:$0xf]
    %v990 = vld [vmem:[#allocation12 + $0x18] sm:$0xf]
    %v991 = vld [vmem:[#allocation12 + $0x1c] sm:$0xf]
    %v992 = vld [vmem:[#allocation12 + $0x20] sm:$0xf]
    %v993 = vld [vmem:[#allocation12 + $0x24] sm:$0xf]
    %v994 = vld [vmem:[#allocation12 + $0x28] sm:$0xf]
    %v995 = vld [vmem:[#allocation12 + $0x2c] sm:$0xf]
    %v996 = vld [vmem:[#allocation12 + $0x30] sm:$0xf]
    %v997 = vld [vmem:[#allocation12 + $0x34] sm:$0xf]
    %v998 = vld [vmem:[#allocation12 + $0x38] sm:$0xf]
    %v999 = vld [vmem:[#allocation12 + $0x3c] sm:$0xf]
    %v1000 = vld [vmem:[#allocation12 + $0x40] sm:$0xf]
    %v1001 = vld [vmem:[#allocation12 + $0x44] sm:$0xf]
    %v1002 = vld [vmem:[#allocation12 + $0x48] sm:$0xf]
    %v1003 = vld [vmem:[#allocation12 + $0x4c] sm:$0xf]
    %v1004 = vld [vmem:[#allocation12 + $0x50] sm:$0xf]
    %v1005 = vld [vmem:[#allocation12 + $0x54] sm:$0xf]
    %v1006 = vld [vmem:[#allocation12 + $0x58] sm:$0xf]
    %v1007 = vld [vmem:[#allocation12 + $0x5c] sm:$0xf]
    %v1008 = vld [vmem:[#allocation12 + $0x60] sm:$0xf]
    %v1009 = vld [vmem:[#allocation12 + $0x64] sm:$0xf]
    %v1010 = vld [vmem:[#allocation12 + $0x68] sm:$0xf]
    %v1011 = vld [vmem:[#allocation12 + $0x6c] sm:$0xf]
    %v1012 = vld [vmem:[#allocation12 + $0x70] sm:$0xf]
    %v1013 = vld [vmem:[#allocation12 + $0x74] sm:$0xf]
    %v1014 = vld [vmem:[#allocation12 + $0x78] sm:$0xf]
    %v1015 = vld [vmem:[#allocation12 + $0x7c] sm:$0xf]
    %v1016 = vld [vmem:[#allocation13] sm:$0x1]
    %v1018 = vperm.slane %v1016, 0
    %v1052 = vunpack.c.l.b16 %v984
    %v1053 = vunpack.c.l.b16 %v985
    %v1054 = vunpack.c.l.b16 %v986
    %v1055 = vunpack.c.l.b16 %v987
    %v1056 = vunpack.c.l.b16 %v988
    %v1057 = vunpack.c.l.b16 %v989
    %v1058 = vunpack.c.l.b16 %v990
    %v1059 = vunpack.c.l.b16 %v991
    %v1060 = vunpack.c.l.b16 %v992
    %v1061 = vunpack.c.l.b16 %v993
    %v1062 = vunpack.c.l.b16 %v994
    %v1063 = vunpack.c.l.b16 %v995
    %v1064 = vunpack.c.l.b16 %v996
    %v1065 = vunpack.c.l.b16 %v997
    %v1066 = vunpack.c.l.b16 %v998
    %v1067 = vunpack.c.l.b16 %v999
    %v1068 = vunpack.c.l.b16 %v1000
    %v1069 = vunpack.c.l.b16 %v1001
    %v1070 = vunpack.c.l.b16 %v1002
    %v1071 = vunpack.c.l.b16 %v1003
    %v1072 = vunpack.c.l.b16 %v1004
    %v1073 = vunpack.c.l.b16 %v1005
    %v1074 = vunpack.c.l.b16 %v1006
    %v1075 = vunpack.c.l.b16 %v1007
    %v1076 = vunpack.c.l.b16 %v1008
    %v1077 = vunpack.c.l.b16 %v1009
    %v1078 = vunpack.c.l.b16 %v1010
    %v1079 = vunpack.c.l.b16 %v1011
    %v1080 = vunpack.c.l.b16 %v1012
    %v1081 = vunpack.c.l.b16 %v1013
    %v1082 = vunpack.c.l.b16 %v1014
    %v1083 = vunpack.c.l.b16 %v1015
    %v1084 = vpack.c.b16 %v1053, %v1052
    %v1085 = vpack.c.b16 %v1055, %v1054
    %v1086 = vpack.c.b16 %v1057, %v1056
    %v1087 = vpack.c.b16 %v1059, %v1058
    %v1088 = vpack.c.b16 %v1061, %v1060
    %v1089 = vpack.c.b16 %v1063, %v1062
    %v1090 = vpack.c.b16 %v1065, %v1064
    %v1091 = vpack.c.b16 %v1067, %v1066
    %v1092 = vpack.c.b16 %v1069, %v1068
    %v1093 = vpack.c.b16 %v1071, %v1070
    %v1094 = vpack.c.b16 %v1073, %v1072
    %v1095 = vpack.c.b16 %v1075, %v1074
    %v1096 = vpack.c.b16 %v1077, %v1076
    %v1097 = vpack.c.b16 %v1079, %v1078
    %v1098 = vpack.c.b16 %v1081, %v1080
    %v1099 = vpack.c.b16 %v1083, %v1082
    %1116 = vmatpush.bf16.msra.mxu0 %v1091
    %1117 = vmatpush.bf16.msra.mxu0 %v1090
    %1118 = vmatpush.bf16.msra.mxu0 %v1089
    %1119 = vmatpush.bf16.msra.mxu0 %v1088
    %1120 = vmatpush.bf16.msra.mxu0 %v1087
    %1121 = vmatpush.bf16.msra.mxu0 %v1086
    %1122 = vmatpush.bf16.msra.mxu0 %v1085
    %1123 = vmatpush.bf16.msra.mxu0 %v1084
    %1124 = vmatmul.bf16.gmra.mxu0 %v982
    %v1125 = vpop.f32.mrf.mxu0
    %v1126 = vadd.f32 %v1018, %v1125
    %v1127 = vpop.f32.mrf.mxu0
    %1128 = vdwg.mxu0
    %1129 = vmatpush.bf16.msra.mxu0 %v1099
    %1130 = vmatpush.bf16.msra.mxu0 %v1098
    %1131 = vmatpush.bf16.msra.mxu0 %v1097
    %1132 = vmatpush.bf16.msra.mxu0 %v1096
    %1133 = vmatpush.bf16.msra.mxu0 %v1095
    %1134 = vmatpush.bf16.msra.mxu0 %v1094
    %1135 = vmatpush.bf16.msra.mxu0 %v1093
    %1136 = vmatpush.bf16.msra.mxu0 %v1092
    %1137 = vmatmul.bf16.gmra.mxu0 %v983
    %v1138 = vpop.f32.mrf.mxu0
    %v1139 = vadd.f32 %v1126, %v1138
    %v1140 = vpop.f32.mrf.mxu0
    %1141 = vdwg.mxu0
    %vm1142 = vcmask 15360
    %1143 = vst.msk [vmem:[%s14] sm:$0xff] %vm1142, %v1139
    // Predicated region
    $region90: #{deep_network_forward.1} parent=1 // pred_check
      _
    $region91: #{deep_network_forward.1} parent=1 // pred_check_branch
      %1145 = sbr.rel (0) target = $region93
    $region92: #{deep_network_forward.1} parent=1 // pred_region
      _
    $region93: #{deep_network_forward.1} parent=1 // pred_fallthru
      _
    // Predicated region
    $region94: #{deep_network_forward.1} parent=1 // pred_check
      _
    $region95: #{deep_network_forward.1} parent=1 // pred_check_branch
      %1147 = sbr.rel (0) target = $region97
    $region96: #{deep_network_forward.1} parent=1 // pred_region
      _
    $region97: #{deep_network_forward.1} parent=1 // pred_fallthru
      _
    %1148 = vsyncpa [#allocation3], 1
    %1149 = vsyncpa [#allocation5], 1
    %1150 = vsyncpa [#allocation8], 1
    %1151 = vsyncpa [#allocation11], 1
    %1152 = vsyncpa [#allocation14], 1

</llo_original>
